<compile_context>
chip_gen: v5e
topology: v5e:2x2
jax: 0.10.0
libtpu: 0.0.40
codegen_flags: <defaults>
</compile_context>

<pallas_src>
import jax
import jax.numpy as jnp
from jax.experimental import pallas as pl
from jax.experimental.pallas import tpu as pltpu

_TARGET = (5.0, 0.0, 1.0)


def _f_kernel(x_ref, o_ref):
    # x_ref: (3,) f32 in SMEM, o_ref: (1,) f32 in SMEM.
    # Target offsets are compile-time immediates; three reads, a few FLOPs.
    d0 = x_ref[0] - _TARGET[0]
    d1 = x_ref[1] - _TARGET[1]
    d2 = x_ref[2] - _TARGET[2]
    o_ref[0] = d0 * d0 + d1 * d1 + d2 * d2


def _f_pallas(x):
    # x: (3,) f32. Returns (1,) f32.
    return pl.pallas_call(
        _f_kernel,
        out_shape=jax.ShapeDtypeStruct((1,), jnp.float32),
        in_specs=[pl.BlockSpec(memory_space=pltpu.SMEM)],
        out_specs=pl.BlockSpec(memory_space=pltpu.SMEM),
        cost_estimate=pl.CostEstimate(
            flops=9, transcendentals=0, bytes_accessed=16
        ),
    )(x)


# --- differentiable wrapper around the Pallas call -------------------------
@jax.custom_vjp
def _net_f(pars):
    # pars: (3,) f32. Squeeze stays inside the jitted region.
    return _f_pallas(pars)[0]


def _net_f_fwd(pars):
    return _f_pallas(pars)[0], pars


def _net_f_bwd(pars, g):
    target = jnp.array(_TARGET, dtype=jnp.float32)
    return (g * 2.0 * (pars - target),)


_net_f.defvjp(_net_f_fwd, _net_f_bwd)


@jax.jit
def net_forward(pars: jax.Array) -> jax.Array:
    """Equivalent of Net(pars).forward(_) -> scalar f32."""
    if pars.dtype != jnp.float32:      # static check: no HLO when already f32
        pars = pars.astype(jnp.float32)
    return _net_f(pars)


if __name__ == "__main__":
    key = jax.random.PRNGKey(0)
    # deterministic "parameter" x of shape (3,) (what Net.__init__ stores)
    pars = jax.random.normal(key, (3,), dtype=jnp.float32)

    result = net_forward(pars)
    jax.block_until_ready(result)

    # pure-JAX reference check of the forward pass
    ref = (pars[0] - 5.0) ** 2 + pars[1] ** 2 + (pars[2] - 1.0) ** 2
    assert jnp.allclose(result, ref, rtol=1e-6, atol=1e-6), (result, ref)

    # gradient check (the intended use of this Net): grad = 2*(x - [5,0,1])
    g = jax.block_until_ready(jax.grad(net_forward)(pars))
    g_ref = 2.0 * (pars - jnp.array([5.0, 0.0, 1.0], dtype=jnp.float32))
    assert jnp.allclose(g, g_ref, rtol=1e-6, atol=1e-6), (g, g_ref)

    print("KERNEL_OK")
</pallas_src>

<mosaic_0001>
module attributes {stable_mosaic.version = 11 : i64} {
  func.func @_f_kernel(%arg0: memref<3xf32, #tpu.memory_space<smem>>, %arg1: memref<1xf32, #tpu.memory_space<smem>>) attributes {dimension_semantics = [], scalar_prefetch = 0 : i64, scratch_operands = 0 : i64, tpu.core_type = #tpu.core_type<tc>} {
    %c0 = arith.constant 0 : index
    %0 = memref.load %arg0[%c0] : memref<3xf32, #tpu.memory_space<smem>>
    %cst = arith.constant 5.000000e+00 : f32
    %1 = arith.subf %0, %cst : f32
    %c1 = arith.constant 1 : index
    %2 = memref.load %arg0[%c1] : memref<3xf32, #tpu.memory_space<smem>>
    %cst_0 = arith.constant 0.000000e+00 : f32
    %3 = arith.subf %2, %cst_0 : f32
    %c2 = arith.constant 2 : index
    %4 = memref.load %arg0[%c2] : memref<3xf32, #tpu.memory_space<smem>>
    %cst_1 = arith.constant 1.000000e+00 : f32
    %5 = arith.subf %4, %cst_1 : f32
    %6 = arith.mulf %1, %1 : f32
    %7 = arith.mulf %3, %3 : f32
    %8 = arith.addf %6, %7 : f32
    %9 = arith.mulf %5, %5 : f32
    %10 = arith.addf %8, %9 : f32
    %c0_2 = arith.constant 0 : index
    %11 = memref.load %arg1[%c0_2] : memref<1xf32, #tpu.memory_space<smem>>
    memref.store %10, %arg1[%c0_2] : memref<1xf32, #tpu.memory_space<smem>>
    return
  }
}

</mosaic_0001>

<llo_original>
// kernel: net_forward.1
$region0: #{net_forward.1}
  #allocation0 [shape = 'u32[]', space=smem, size = 0x4, offset = 0x4, fixed_abs, tag = 'smem constant byte address 0x4 - core index']
  #allocation1 [shape = 'u32[72,128]{1,0:T(1,128)}', space=vmem, size = 0x9000, scoped, tag = 'internal scratch']
  %s0 = inlined_call_operand.hbm [shape: f32[3], index: 0, kind: input, shape index: {}]
  %s1 = inlined_call_operand.hbm [shape: f32[1], index: 1, kind: output, shape index: {}]
  %s2 = sld [smem:[#allocation0]]
  $region18: #{net_forward.1} parent=0
    _
  %s4 = ssub.s32 1, %s2
  %s5 = scalar_select 0, %s4, %s2
  $region1: #{net_forward.1} parent=0
    #allocation2 [shape = 'u8[512]{0}', space=smem, size = 0x200, scoped, tag = 'input window, operand 0, single buffered']
    #allocation3 [shape = 's32[1]{0}', space=sflag, size = 0x4, scoped, tag = 'scoped memory for net_forward.1']
    #allocation4 [shape = 's32[1]{0}', space=sflag, size = 0x4, scoped, tag = 'scoped memory for net_forward.1']
    #allocation5 [shape = 'u8[512]{0}', space=smem, size = 0x200, scoped, tag = 'output window, operand 0, single buffered']
    %6 = vsyncpa [#allocation3], 0
    %7 = vsyncpa [#allocation4], 0
    // Predicated region
    $region2: #{net_forward.1} parent=1 // pred_check
      _
    $region3: #{net_forward.1} parent=1 // pred_check_branch
      %9 = sbr.rel (0) target = $region5
    $region4: #{net_forward.1} parent=1 // pred_region
      %11 = vsyncadd [#allocation3], 0
      %s13 = sshll.u32 %s0, 4
      %s14 = int_to_ptr.hbm [resolvable:$true] %s13
      %16 = dma.hbm_to_smem %s14, 16, [#allocation2], [#allocation3]
    $region5: #{net_forward.1} parent=1 // pred_fallthru
      _
    // Predicated region
    $region6: #{net_forward.1} parent=1 // pred_check
      _
    $region7: #{net_forward.1} parent=1 // pred_check_branch
      %18 = sbr.rel (0) target = $region9
    $region8: #{net_forward.1} parent=1 // pred_region
      %20 = dma.done [#allocation3], 16
    $region9: #{net_forward.1} parent=1 // pred_fallthru
      _
    %21 = sfence
    %s22 = sld [smem:[#allocation2]]
    %s23 = ssub.f32 %s22, 5.0
    %s24 = sld [smem:[#allocation2 + $0x1]]
    %s25 = sld [smem:[#allocation2 + $0x2]]
    %s26 = ssub.f32 %s25, 1.0
    %s27 = smul.f32 %s23, %s23
    %s28 = smul.f32 %s24, %s24
    %s29 = sadd.f32 %s27, %s28
    %s30 = smul.f32 %s26, %s26
    %s31 = sadd.f32 %s29, %s30
    %s32 = scalar_lea.smem [#allocation5], 0
    %33 = sst [smem:[%s32]] %s31
    // Predicated region
    $region10: #{net_forward.1} parent=1 // pred_check
      _
    $region11: #{net_forward.1} parent=1 // pred_check_branch
      %35 = sbr.rel (0) target = $region13
    $region12: #{net_forward.1} parent=1 // pred_region
      %37 = vsyncadd [#allocation4], 0
      %s39 = sshll.u32 %s1, 4
      %s40 = int_to_ptr.hbm [resolvable:$true] %s39
      %42 = dma.smem_to_hbm [#allocation5], 16, %s40, [#allocation4]
    $region13: #{net_forward.1} parent=1 // pred_fallthru
      _
    // Predicated region
    $region14: #{net_forward.1} parent=1 // pred_check
      _
    $region15: #{net_forward.1} parent=1 // pred_check_branch
      %44 = sbr.rel (0) target = $region17
    $region16: #{net_forward.1} parent=1 // pred_region
      %46 = dma.done [#allocation4], 16
    $region17: #{net_forward.1} parent=1 // pred_fallthru
      _
    %47 = sfence
    %48 = vsyncpa [#allocation3], 1
    %49 = vsyncpa [#allocation4], 1

</llo_original>
